<compile_context>
chip_gen: v5e
topology: v5e:2x2
jax: 0.10.0
libtpu: 0.0.40
codegen_flags: <defaults>
</compile_context>

<pallas_src>
import math

import jax
import jax.numpy as jnp
from jax import lax
from jax.experimental import pallas as pl
from jax.experimental.pallas import tpu as pltpu

LN_EPS = 1e-5
INV_SQRT2 = 1.0 / math.sqrt(2.0)


# ---------------------------------------------------------------------------
# Kernels
# ---------------------------------------------------------------------------

def _layernorm_f32(x_ref, gamma_ref, beta_ref):
    """LayerNorm with f32 statistics on the current row tile."""
    x = x_ref[...].astype(jnp.float32)
    inv_d = jnp.float32(1.0 / x.shape[-1])
    mean = jnp.sum(x, axis=-1, keepdims=True) * inv_d
    xc = x - mean
    var = jnp.sum(xc * xc, axis=-1, keepdims=True) * inv_d
    xn = xc * lax.rsqrt(var + LN_EPS)
    return xn * gamma_ref[...].astype(jnp.float32) + beta_ref[...].astype(jnp.float32)


def _ff_kernel_resident(x_ref, gamma_ref, beta_ref, w1_ref, b1_ref, w2_ref, b2_ref,
                        o_ref):
    """Weights fully VMEM-resident; 1-D grid over row tiles; no accumulator."""
    xn = _layernorm_f32(x_ref, gamma_ref, beta_ref).astype(w1_ref.dtype)

    # Linear(dim -> hidden) on the MXU, f32 accumulation.
    h = jnp.dot(xn, w1_ref[...], preferred_element_type=jnp.float32)
    h = h + b1_ref[...].astype(jnp.float32)

    # Exact (erf) GELU — matches torch.nn.GELU default. f32 (safe on v5e).
    h = 0.5 * h * (1.0 + lax.erf(h * INV_SQRT2))

    # Dropout(p=0.0) at inference: identity (no-op).

    # Linear(hidden -> dim), written straight to the output tile.
    y = jnp.dot(h.astype(w2_ref.dtype), w2_ref[...],
                preferred_element_type=jnp.float32)
    o_ref[...] = (y + b2_ref[...].astype(jnp.float32)).astype(o_ref.dtype)


def _ff_kernel_tiled(x_ref, gamma_ref, beta_ref, w1_ref, b1_ref, w2_ref, b2_ref,
                     o_ref, xn_ref, acc_ref):
    """Fallback: hidden dim tiled over the trailing grid axis, f32 accumulator."""
    h_idx = pl.program_id(1)

    @pl.when(h_idx == 0)
    def _():
        # LayerNorm computed once per row tile, cached at the MXU input dtype.
        xn_ref[...] = _layernorm_f32(x_ref, gamma_ref, beta_ref).astype(xn_ref.dtype)

    h = jnp.dot(xn_ref[...], w1_ref[...], preferred_element_type=jnp.float32)
    h = h + b1_ref[...].astype(jnp.float32)
    h = 0.5 * h * (1.0 + lax.erf(h * INV_SQRT2))

    contrib = jnp.dot(h.astype(w2_ref.dtype), w2_ref[...],
                      preferred_element_type=jnp.float32)

    # Initialize the accumulator with the first dot (no zeros + "+=" pass).
    @pl.when(h_idx == 0)
    def _():
        acc_ref[...] = contrib

    @pl.when(h_idx > 0)
    def _():
        acc_ref[...] += contrib

    @pl.when(h_idx == pl.num_programs(1) - 1)
    def _():
        o_ref[...] = (acc_ref[...] + b2_ref[...].astype(jnp.float32)).astype(o_ref.dtype)


# ---------------------------------------------------------------------------
# Wrapper
# ---------------------------------------------------------------------------

def _round_up(x, m):
    return (x + m - 1) // m * m


def _cdiv(a, b):
    return (a + b - 1) // b


def _pick_hidden_tile(H, target):
    """Largest hidden-chunk size that keeps BlockSpecs legal (mult. of 128 or == H)."""
    if H <= target:
        return H
    start = (target // 128) * 128
    for th in range(start, 127, -128):
        if H % th == 0:
            return th
    return H  # fall back: whole hidden dim resident


def _vmem_capacity_bytes():
    """Physical VMEM capacity (per TensorCore); conservative 64 MiB fallback (v7x)."""
    try:
        cap = int(pltpu.get_tpu_info().vmem_capacity_bytes)
        if cap > 0:
            return cap
    except Exception:
        pass
    return 64 * 1024 * 1024


def _pick_row_tile(M, tm_max):
    """Balanced row tile: avoids mostly-padded last tiles and gives the
    'parallel' axis >= 2 tiles (both v7x TensorCores get work) when possible."""
    n_tiles = max(_cdiv(M, tm_max), 1)
    if n_tiles < 2 and M > 8:
        n_tiles = 2
    tm = _round_up(_cdiv(M, n_tiles), 8)
    return max(tm, 8)


def feed_forward(x, gamma, beta, w1, b1, w2, b2, *,
                 tm_max=512, hidden_tile=1024,
                 cast_weights_to_bf16=False, force_hidden_tiling=False):
    """x: (B, S, D). Weights: gamma/beta (D,), w1 (D,H), b1 (H,), w2 (H,D), b2 (D,)."""
    B, S, D = x.shape
    H = w1.shape[1]
    M = B * S

    if cast_weights_to_bf16:
        # Numerics caveat: looser than the f32 reference; f32 accumulation kept.
        w1 = w1.astype(jnp.bfloat16)
        w2 = w2.astype(jnp.bfloat16)

    x_isz = jnp.dtype(x.dtype).itemsize
    w_isz = jnp.dtype(w1.dtype).itemsize

    gamma2 = gamma.reshape(1, D)
    beta2 = beta.reshape(1, D)
    b1_2 = b1.reshape(1, H)
    b2_2 = b2.reshape(1, D)

    # Small params (biases / LN) + both weight matrices, in bytes.
    param_bytes = ((w1.size + w2.size) * w_isz
                   + (b1.size + b2.size + gamma.size + beta.size) * 4)

    headroom = 8 * 1024 * 1024
    vmem_budget = max(_vmem_capacity_bytes() - headroom, 24 * 1024 * 1024)

    tm = _pick_row_tile(M, tm_max)

    def resident_vmem(tm_):
        return (2 * tm_ * D * x_isz            # x tile, double-buffered
                + 2 * tm_ * D * x_isz          # out tile, double-buffered
                + 2 * param_bytes              # weights/biases (conservative 2x)
                + tm_ * H * 4                  # f32 GELU intermediate
                + tm_ * D * 4)                 # f32 LN intermediate

    # Shrink the row tile if that is what it takes to keep the weights resident.
    tm_res = tm
    while resident_vmem(tm_res) > vmem_budget and tm_res > 64:
        tm_res = max(_round_up(tm_res // 2, 8), 8)

    use_resident = (not force_hidden_tiling) and resident_vmem(tm_res) <= vmem_budget

    if use_resident:
        tm = tm_res
        M_pad = _round_up(M, tm)
        x2d = x.reshape(M, D)
        if M_pad != M:
            x2d = jnp.pad(x2d, ((0, M_pad - M), (0, 0)))

        grid = (M_pad // tm,)
        est_vmem = resident_vmem(tm)
        vmem_limit = int(min(max(int(1.5 * est_vmem), 32 * 1024 * 1024), vmem_budget))

        cost = pl.CostEstimate(
            flops=int(4 * M_pad * D * H),
            transcendentals=int(M_pad * H),
            bytes_accessed=int(2 * M_pad * D * x_isz + param_bytes),
        )

        out2d = pl.pallas_call(
            _ff_kernel_resident,
            out_shape=jax.ShapeDtypeStruct((M_pad, D), x.dtype),
            grid_spec=pltpu.PrefetchScalarGridSpec(
                num_scalar_prefetch=0,
                grid=grid,
                in_specs=[
                    pl.BlockSpec((tm, D), lambda i: (i, 0)),   # x rows
                    pl.BlockSpec((1, D), lambda i: (0, 0)),    # gamma (resident)
                    pl.BlockSpec((1, D), lambda i: (0, 0)),    # beta  (resident)
                    pl.BlockSpec((D, H), lambda i: (0, 0)),    # w1    (resident)
                    pl.BlockSpec((1, H), lambda i: (0, 0)),    # b1    (resident)
                    pl.BlockSpec((H, D), lambda i: (0, 0)),    # w2    (resident)
                    pl.BlockSpec((1, D), lambda i: (0, 0)),    # b2    (resident)
                ],
                out_specs=pl.BlockSpec((tm, D), lambda i: (i, 0)),
            ),
            compiler_params=pltpu.CompilerParams(
                dimension_semantics=("parallel",),
                vmem_limit_bytes=vmem_limit,
            ),
            cost_estimate=cost,
        )(x2d, gamma2, beta2, w1, b1_2, w2, b2_2)

        return out2d[:M].reshape(B, S, D)

    # ---------------- fallback: hidden dimension tiled ----------------
    th = _pick_hidden_tile(H, hidden_tile)
    M_pad = _round_up(M, tm)
    x2d = x.reshape(M, D)
    if M_pad != M:
        x2d = jnp.pad(x2d, ((0, M_pad - M), (0, 0)))

    grid = (M_pad // tm, H // th)
    n_row_tiles = M_pad // tm

    est_vmem = (2 * 2 * tm * D * x_isz                        # x + out tiles
                + 2 * (D * th + th * D + th + 3 * D) * w_isz  # weight/bias chunks
                + tm * D * (w_isz + 4)                        # xn scratch + f32 acc
                + tm * th * 4)                                # f32 GELU intermediate
    vmem_limit = int(min(max(2 * est_vmem, 32 * 1024 * 1024), vmem_budget))

    cost = pl.CostEstimate(
        flops=int(4 * M_pad * D * H),
        transcendentals=int(M_pad * H),
        # Weights are re-streamed once per row tile in this configuration.
        bytes_accessed=int(2 * M_pad * D * x_isz + n_row_tiles * param_bytes),
    )

    out2d = pl.pallas_call(
        _ff_kernel_tiled,
        out_shape=jax.ShapeDtypeStruct((M_pad, D), x.dtype),
        grid_spec=pltpu.PrefetchScalarGridSpec(
            num_scalar_prefetch=0,
            grid=grid,
            in_specs=[
                pl.BlockSpec((tm, D), lambda i, h: (i, 0)),   # x rows (resident over h)
                pl.BlockSpec((1, D), lambda i, h: (0, 0)),    # gamma
                pl.BlockSpec((1, D), lambda i, h: (0, 0)),    # beta
                pl.BlockSpec((D, th), lambda i, h: (0, h)),   # w1 hidden chunk
                pl.BlockSpec((1, th), lambda i, h: (0, h)),   # b1 hidden chunk
                pl.BlockSpec((th, D), lambda i, h: (h, 0)),   # w2 hidden chunk
                pl.BlockSpec((1, D), lambda i, h: (0, 0)),    # b2
            ],
            out_specs=pl.BlockSpec((tm, D), lambda i, h: (i, 0)),
            scratch_shapes=[
                pltpu.VMEM((tm, D), w1.dtype),     # cached LayerNorm output
                pltpu.VMEM((tm, D), jnp.float32),  # f32 output accumulator
            ],
        ),
        compiler_params=pltpu.CompilerParams(
            dimension_semantics=("parallel", "arbitrary"),
            vmem_limit_bytes=vmem_limit,
        ),
        cost_estimate=cost,
    )(x2d, gamma2, beta2, w1, b1_2, w2, b2_2)

    return out2d[:M].reshape(B, S, D)


# ---------------------------------------------------------------------------
# Reference & test
# ---------------------------------------------------------------------------

def reference(x, gamma, beta, w1, b1, w2, b2):
    xf = x.astype(jnp.float32)
    mean = jnp.mean(xf, axis=-1, keepdims=True)
    var = jnp.mean((xf - mean) ** 2, axis=-1, keepdims=True)
    xn = (xf - mean) / jnp.sqrt(var + LN_EPS) * gamma + beta
    h = xn @ w1.astype(jnp.float32) + b1
    h = 0.5 * h * (1.0 + lax.erf(h * INV_SQRT2))
    y = h @ w2.astype(jnp.float32) + b2
    return y.astype(x.dtype)


def _make_params(key, D, H):
    kx, kw1, kb1, kw2, kb2 = jax.random.split(key, 5)
    gamma = jnp.ones((D,), jnp.float32)
    beta = jnp.zeros((D,), jnp.float32)
    lim1 = 1.0 / math.sqrt(D)
    lim2 = 1.0 / math.sqrt(H)
    w1 = jax.random.uniform(kw1, (D, H), jnp.float32, -lim1, lim1)
    b1 = jax.random.uniform(kb1, (H,), jnp.float32, -lim1, lim1)
    w2 = jax.random.uniform(kw2, (H, D), jnp.float32, -lim2, lim2)
    b2 = jax.random.uniform(kb2, (D,), jnp.float32, -lim2, lim2)
    return kx, gamma, beta, w1, b1, w2, b2


if __name__ == "__main__":
    key = jax.random.PRNGKey(0)
    k1, k2 = jax.random.split(key)

    # Test 1: small ViT-like shapes — weight-resident fast path.
    B, S, D, H = 2, 8, 32, 64
    kx, gamma, beta, w1, b1, w2, b2 = _make_params(k1, D, H)
    x = jax.random.normal(kx, (B, S, D), dtype=jnp.float32)

    out = jax.block_until_ready(feed_forward(x, gamma, beta, w1, b1, w2, b2))
    ref = reference(x, gamma, beta, w1, b1, w2, b2)
    assert out.shape == (B, S, D)
    assert jnp.allclose(out, ref, atol=1e-4, rtol=1e-4), "resident path mismatch"

    # Test 2: exercise the hidden-tiled fallback path (multi-step accumulator).
    B2, S2, D2, H2 = 2, 8, 128, 256
    kx2, gamma2_, beta2_, w1_2, b1_2, w2_2, b2_2 = _make_params(k2, D2, H2)
    x2 = jax.random.normal(kx2, (B2, S2, D2), dtype=jnp.float32)

    out2 = jax.block_until_ready(
        feed_forward(x2, gamma2_, beta2_, w1_2, b1_2, w2_2, b2_2,
                     force_hidden_tiling=True, hidden_tile=128))
    ref2 = reference(x2, gamma2_, beta2_, w1_2, b1_2, w2_2, b2_2)
    assert out2.shape == (B2, S2, D2)
    assert jnp.allclose(out2, ref2, atol=1e-4, rtol=1e-4), "tiled path mismatch"

    print("KERNEL_OK")
</pallas_src>

<mosaic_0001>
module attributes {stable_mosaic.version = 11 : i64} {
  func.func @_ff_kernel_resident(%arg0: i32, %arg1: memref<8x32xf32, #tpu.memory_space<vmem>>, %arg2: memref<1x32xf32, #tpu.memory_space<vmem>>, %arg3: memref<1x32xf32, #tpu.memory_space<vmem>>, %arg4: memref<32x64xf32, #tpu.memory_space<vmem>>, %arg5: memref<1x64xf32, #tpu.memory_space<vmem>>, %arg6: memref<64x32xf32, #tpu.memory_space<vmem>>, %arg7: memref<1x32xf32, #tpu.memory_space<vmem>>, %arg8: memref<8x32xf32, #tpu.memory_space<vmem>>) attributes {dimension_semantics = [#tpu.dimension_semantics<parallel>], iteration_bounds = array<i64: 2>, scalar_prefetch = 0 : i64, scratch_operands = 0 : i64, tpu.core_type = #tpu.core_type<tc>, window_params = [{transform_indices = @transform_0, window_bounds = array<i64: 8, 32>}, {pipeline_mode = #tpu.pipeline_mode<synchronous>, transform_indices = @transform_1, window_bounds = array<i64: 1, 32>}, {pipeline_mode = #tpu.pipeline_mode<synchronous>, transform_indices = @transform_2, window_bounds = array<i64: 1, 32>}, {pipeline_mode = #tpu.pipeline_mode<synchronous>, transform_indices = @transform_3, window_bounds = array<i64: 32, 64>}, {pipeline_mode = #tpu.pipeline_mode<synchronous>, transform_indices = @transform_4, window_bounds = array<i64: 1, 64>}, {pipeline_mode = #tpu.pipeline_mode<synchronous>, transform_indices = @transform_5, window_bounds = array<i64: 64, 32>}, {pipeline_mode = #tpu.pipeline_mode<synchronous>, transform_indices = @transform_6, window_bounds = array<i64: 1, 32>}, {transform_indices = @transform_7, window_bounds = array<i64: 8, 32>}]} {
    %c0 = arith.constant 0 : index
    %c0_0 = arith.constant 0 : index
    %0 = vector.load %arg1[%c0, %c0_0] : memref<8x32xf32, #tpu.memory_space<vmem>>, vector<8x32xf32>
    %cst = arith.constant dense<0.000000e+00> : vector<8xf32>
    %1 = vector.multi_reduction <add>, %0, %cst [1] : vector<8x32xf32> to vector<8xf32>
    %2 = vector.shape_cast %1 : vector<8xf32> to vector<8x1xf32>
    %cst_1 = arith.constant 3.125000e-02 : f32
    %3 = vector.broadcast %cst_1 : f32 to vector<8x1xf32>
    %4 = arith.mulf %2, %3 : vector<8x1xf32>
    %5 = vector.broadcast %4 : vector<8x1xf32> to vector<8x32xf32>
    %6 = arith.subf %0, %5 : vector<8x32xf32>
    %7 = arith.mulf %6, %6 : vector<8x32xf32>
    %cst_2 = arith.constant dense<0.000000e+00> : vector<8xf32>
    %8 = vector.multi_reduction <add>, %7, %cst_2 [1] : vector<8x32xf32> to vector<8xf32>
    %9 = vector.shape_cast %8 : vector<8xf32> to vector<8x1xf32>
    %cst_3 = arith.constant 3.125000e-02 : f32
    %10 = vector.broadcast %cst_3 : f32 to vector<8x1xf32>
    %11 = arith.mulf %9, %10 : vector<8x1xf32>
    %cst_4 = arith.constant 9.99999974E-6 : f32
    %12 = vector.broadcast %cst_4 : f32 to vector<8x1xf32>
    %13 = arith.addf %11, %12 : vector<8x1xf32>
    %14 = math.rsqrt %13 : vector<8x1xf32>
    %15 = vector.broadcast %14 : vector<8x1xf32> to vector<8x32xf32>
    %16 = arith.mulf %6, %15 : vector<8x32xf32>
    %c0_5 = arith.constant 0 : index
    %c0_6 = arith.constant 0 : index
    %17 = vector.load %arg2[%c0_5, %c0_6] : memref<1x32xf32, #tpu.memory_space<vmem>>, vector<1x32xf32>
    %18 = vector.broadcast %17 : vector<1x32xf32> to vector<8x32xf32>
    %19 = arith.mulf %16, %18 : vector<8x32xf32>
    %c0_7 = arith.constant 0 : index
    %c0_8 = arith.constant 0 : index
    %20 = vector.load %arg3[%c0_7, %c0_8] : memref<1x32xf32, #tpu.memory_space<vmem>>, vector<1x32xf32>
    %21 = vector.broadcast %20 : vector<1x32xf32> to vector<8x32xf32>
    %22 = arith.addf %19, %21 : vector<8x32xf32>
    %c0_9 = arith.constant 0 : index
    %c0_10 = arith.constant 0 : index
    %23 = vector.load %arg4[%c0_9, %c0_10] : memref<32x64xf32, #tpu.memory_space<vmem>>, vector<32x64xf32>
    %cst_11 = arith.constant dense<0.000000e+00> : vector<8x64xf32>
    %24 = tpu.matmul %22, %23, %cst_11 {dimension_numbers = #tpu.dot_dimension_numbers<[1], [0], [0], [1], [0, 0, 1, 1], [], []>} : vector<8x32xf32>, vector<32x64xf32>, vector<8x64xf32> -> vector<8x64xf32>
    %c0_12 = arith.constant 0 : index
    %c0_13 = arith.constant 0 : index
    %25 = vector.load %arg5[%c0_12, %c0_13] : memref<1x64xf32, #tpu.memory_space<vmem>>, vector<1x64xf32>
    %26 = vector.broadcast %25 : vector<1x64xf32> to vector<8x64xf32>
    %27 = arith.addf %24, %26 : vector<8x64xf32>
    %cst_14 = arith.constant 5.000000e-01 : f32
    %28 = vector.broadcast %cst_14 : f32 to vector<8x64xf32>
    %29 = arith.mulf %28, %27 : vector<8x64xf32>
    %cst_15 = arith.constant 0.707106769 : f32
    %30 = vector.broadcast %cst_15 : f32 to vector<8x64xf32>
    %31 = arith.mulf %27, %30 : vector<8x64xf32>
    %32 = math.erf %31 : vector<8x64xf32>
    %cst_16 = arith.constant 1.000000e+00 : f32
    %33 = vector.broadcast %cst_16 : f32 to vector<8x64xf32>
    %34 = arith.addf %33, %32 : vector<8x64xf32>
    %35 = arith.mulf %29, %34 : vector<8x64xf32>
    %c0_17 = arith.constant 0 : index
    %c0_18 = arith.constant 0 : index
    %36 = vector.load %arg6[%c0_17, %c0_18] : memref<64x32xf32, #tpu.memory_space<vmem>>, vector<64x32xf32>
    %cst_19 = arith.constant dense<0.000000e+00> : vector<8x32xf32>
    %37 = tpu.matmul %35, %36, %cst_19 {dimension_numbers = #tpu.dot_dimension_numbers<[1], [0], [0], [1], [0, 0, 1, 1], [], []>} : vector<8x64xf32>, vector<64x32xf32>, vector<8x32xf32> -> vector<8x32xf32>
    %c0_20 = arith.constant 0 : index
    %c0_21 = arith.constant 0 : index
    %38 = vector.load %arg7[%c0_20, %c0_21] : memref<1x32xf32, #tpu.memory_space<vmem>>, vector<1x32xf32>
    %39 = vector.broadcast %38 : vector<1x32xf32> to vector<8x32xf32>
    %40 = arith.addf %37, %39 : vector<8x32xf32>
    %c0_22 = arith.constant 0 : index
    %c0_23 = arith.constant 0 : index
    %41 = vector.load %arg8[%c0_22, %c0_23] : memref<8x32xf32, #tpu.memory_space<vmem>>, vector<8x32xf32>
    tpu.vector_store %arg8[%c0_22, %c0_23], %40 {strides = array<i32>} : memref<8x32xf32, #tpu.memory_space<vmem>>, vector<8x32xf32>,
    return
  }
  func.func @transform_0(%arg0: i32) -> (i32, i32) {
    %c0_i32 = arith.constant 0 : i32
    %c0_i32_0 = arith.constant 0 : i32
    return %arg0, %c0_i32 : i32, i32
  }
  func.func @transform_1(%arg0: i32) -> (i32, i32) {
    %c0_i32 = arith.constant 0 : i32
    %c0_i32_0 = arith.constant 0 : i32
    %c0_i32_1 = arith.constant 0 : i32
    return %c0_i32, %c0_i32_0 : i32, i32
  }
  func.func @transform_2(%arg0: i32) -> (i32, i32) {
    %c0_i32 = arith.constant 0 : i32
    %c0_i32_0 = arith.constant 0 : i32
    %c0_i32_1 = arith.constant 0 : i32
    return %c0_i32, %c0_i32_0 : i32, i32
  }
  func.func @transform_3(%arg0: i32) -> (i32, i32) {
    %c0_i32 = arith.constant 0 : i32
    %c0_i32_0 = arith.constant 0 : i32
    %c0_i32_1 = arith.constant 0 : i32
    return %c0_i32, %c0_i32_0 : i32, i32
  }
  func.func @transform_4(%arg0: i32) -> (i32, i32) {
    %c0_i32 = arith.constant 0 : i32
    %c0_i32_0 = arith.constant 0 : i32
    %c0_i32_1 = arith.constant 0 : i32
    return %c0_i32, %c0_i32_0 : i32, i32
  }
  func.func @transform_5(%arg0: i32) -> (i32, i32) {
    %c0_i32 = arith.constant 0 : i32
    %c0_i32_0 = arith.constant 0 : i32
    %c0_i32_1 = arith.constant 0 : i32
    return %c0_i32, %c0_i32_0 : i32, i32
  }
  func.func @transform_6(%arg0: i32) -> (i32, i32) {
    %c0_i32 = arith.constant 0 : i32
    %c0_i32_0 = arith.constant 0 : i32
    %c0_i32_1 = arith.constant 0 : i32
    return %c0_i32, %c0_i32_0 : i32, i32
  }
  func.func @transform_7(%arg0: i32) -> (i32, i32) {
    %c0_i32 = arith.constant 0 : i32
    %c0_i32_0 = arith.constant 0 : i32
    return %arg0, %c0_i32 : i32, i32
  }
}

</mosaic_0001>

<llo_original>
// kernel: tpu_custom_call.1
$region0: #{tpu_custom_call.1}
  #allocation0 [shape = 'u32[]', space=smem, size = 0x4, offset = 0x4, fixed_abs, tag = 'smem constant byte address 0x4 - core index']
  #allocation1 [shape = 'u32[72,128]{1,0:T(1,128)}', space=vmem, size = 0x9000, scoped, tag = 'internal scratch']
  %s0 = inlined_call_operand.vmem [shape: f32[16,32], index: 0, kind: input, shape index: {}]
  %s1 = inlined_call_operand.vmem [shape: f32[1,32], index: 1, kind: input, shape index: {}]
  %s2 = inlined_call_operand.vmem [shape: f32[1,32], index: 2, kind: input, shape index: {}]
  %s3 = inlined_call_operand.vmem [shape: f32[32,64], index: 3, kind: input, shape index: {}]
  %s4 = inlined_call_operand.vmem [shape: f32[1,64], index: 4, kind: input, shape index: {}]
  %s5 = inlined_call_operand.vmem [shape: f32[64,32], index: 5, kind: input, shape index: {}]
  %s6 = inlined_call_operand.vmem [shape: f32[1,32], index: 6, kind: input, shape index: {}]
  %s7 = inlined_call_operand.hbm [shape: f32[16,32], index: 7, kind: output, shape index: {}]
  %s8 = sld [smem:[#allocation0]]
  $region61: #{tpu_custom_call.1} parent=0
    _
  %s10 = ssub.s32 1, %s8
  %s11 = scalar_select 0, %s10, %s8
  $region1: #{tpu_custom_call.1} parent=0
    #allocation2 [shape = 'u8[8192]{0}', space=vmem, size = 0x2000, scoped, tag = 'output window, operand 0']
    #allocation3 [shape = 's32[2]{0}', space=sflag, size = 0x8, scoped, tag = 'scoped memory for tpu_custom_call.1']
    %12 = vsyncpa [#allocation3], 0
    %s13 = scalar_lea.sflag [#allocation3], 1
    %14 = vsyncpa %s13, 0
    loop: start=0, step=1, limit=4
    $region2: #{tpu_custom_call.1} parent=1 // loop_pre_header
      _
    $region3: #{tpu_custom_call.1} parent=1 // loop_header
      %s16 = sphi 0, %s20
      %p17 = scmp.ge.s32.totalorder %s16, 4
      %s26 = sphi 0, %s28
      %s29 = sphi 0, %s26
      %s30 = sphi 0, %s29
      %s46 = sphi 0, %s30
      %s50 = sphi 0, %s50
      %s52 = sphi 0, %s50
      %s53 = sphi 0, %s52
      %s67 = sphi 0, %s53
      %s71 = sphi 0, %s71
      %s73 = sphi 0, %s71
      %s74 = sphi 0, %s73
      %s88 = sphi 0, %s74
      %s92 = sphi 0, %s92
      %s94 = sphi 0, %s92
      %s95 = sphi 0, %s94
      %s109 = sphi 0, %s95
      %s113 = sphi 0, %s113
      %s115 = sphi 0, %s113
      %s116 = sphi 0, %s115
      %s130 = sphi 0, %s116
      %s134 = sphi 0, %s134
      %s136 = sphi 0, %s134
      %s137 = sphi 0, %s136
      %s151 = sphi 0, %s137
      %s155 = sphi 0, %s155
      %s157 = sphi 0, %s155
      %s158 = sphi 0, %s157
      %s172 = sphi 0, %s158
      %s178 = sphi 0, %s180
      %s181 = sphi 0, %s178
      %s182 = sphi 0, %s181
      %s198 = sphi 0, %s182
    $region4: #{tpu_custom_call.1} parent=1 // loop_header_branch
      %19 = sbr.rel (%p17) target = $region8
    $region5: #{tpu_custom_call.1} parent=1 // loop_body
      %s21 = ssub.s32 %s16, 1
      %s22 = ssub.s32 %s16, 2
      %s23 = sadd.s32 %s16, 1
      %s24 = ssub.s32 %s16, %s23
      %p25 = scmp.eq.s32.totalorder %s24, 0
      %s27 = sadd.s32 %s26, 1
      %s28 = scalar_select %p25, %s26, %s27
      %p31 = pneg %p25
      %p32 = scmp.eq.s32.totalorder %s16, 1
      %p33 = por %p31, %p32
      %p34 = scmp.ne.s32.totalorder %s26, %s29
      %p35 = scmp.eq.s32.totalorder %s16, 0
      %p36 = por %p34, %p35
      %p37 = scmp.ne.s32.totalorder %s26, %s29
      %p38 = scmp.eq.s32.totalorder %s21, 1
      %p39 = por %p37, %p38
      %p40 = scmp.ne.s32.totalorder %s29, %s30
      %p41 = scmp.eq.s32.totalorder %s21, 0
      %p42 = por %p40, %p41
      %p43 = scmp.ne.s32.totalorder %s29, %s30
      %p44 = scmp.eq.s32.totalorder %s22, 1
      %p45 = por %p43, %p44
      %p47 = scmp.ne.s32.totalorder %s30, %s46
      %p48 = scmp.eq.s32.totalorder %s22, 0
      %p49 = por %p47, %p48
      %s51 = sadd.s32 %s50, 1
      %p54 = scmp.eq.s32.totalorder %s16, 1
      %p55 = scmp.ne.s32.totalorder %s50, %s52
      %p56 = scmp.eq.s32.totalorder %s16, 0
      %p57 = por %p55, %p56
      %p58 = scmp.ne.s32.totalorder %s50, %s52
      %p59 = scmp.eq.s32.totalorder %s21, 1
      %p60 = por %p58, %p59
      %p61 = scmp.ne.s32.totalorder %s52, %s53
      %p62 = scmp.eq.s32.totalorder %s21, 0
      %p63 = por %p61, %p62
      %p64 = scmp.ne.s32.totalorder %s52, %s53
      %p65 = scmp.eq.s32.totalorder %s22, 1
      %p66 = por %p64, %p65
      %p68 = scmp.ne.s32.totalorder %s53, %s67
      %p69 = scmp.eq.s32.totalorder %s22, 0
      %p70 = por %p68, %p69
      %s72 = sadd.s32 %s71, 1
      %p75 = scmp.eq.s32.totalorder %s16, 1
      %p76 = scmp.ne.s32.totalorder %s71, %s73
      %p77 = scmp.eq.s32.totalorder %s16, 0
      %p78 = por %p76, %p77
      %p79 = scmp.ne.s32.totalorder %s71, %s73
      %p80 = scmp.eq.s32.totalorder %s21, 1
      %p81 = por %p79, %p80
      %p82 = scmp.ne.s32.totalorder %s73, %s74
      %p83 = scmp.eq.s32.totalorder %s21, 0
      %p84 = por %p82, %p83
      %p85 = scmp.ne.s32.totalorder %s73, %s74
      %p86 = scmp.eq.s32.totalorder %s22, 1
      %p87 = por %p85, %p86
      %p89 = scmp.ne.s32.totalorder %s74, %s88
      %p90 = scmp.eq.s32.totalorder %s22, 0
      %p91 = por %p89, %p90
      %s93 = sadd.s32 %s92, 1
      %p96 = scmp.eq.s32.totalorder %s16, 1
      %p97 = scmp.ne.s32.totalorder %s92, %s94
      %p98 = scmp.eq.s32.totalorder %s16, 0
      %p99 = por %p97, %p98
      %p100 = scmp.ne.s32.totalorder %s92, %s94
      %p101 = scmp.eq.s32.totalorder %s21, 1
      %p102 = por %p100, %p101
      %p103 = scmp.ne.s32.totalorder %s94, %s95
      %p104 = scmp.eq.s32.totalorder %s21, 0
      %p105 = por %p103, %p104
      %p106 = scmp.ne.s32.totalorder %s94, %s95
      %p107 = scmp.eq.s32.totalorder %s22, 1
      %p108 = por %p106, %p107
      %p110 = scmp.ne.s32.totalorder %s95, %s109
      %p111 = scmp.eq.s32.totalorder %s22, 0
      %p112 = por %p110, %p111
      %s114 = sadd.s32 %s113, 1
      %p117 = scmp.eq.s32.totalorder %s16, 1
      %p118 = scmp.ne.s32.totalorder %s113, %s115
      %p119 = scmp.eq.s32.totalorder %s16, 0
      %p120 = por %p118, %p119
      %p121 = scmp.ne.s32.totalorder %s113, %s115
      %p122 = scmp.eq.s32.totalorder %s21, 1
      %p123 = por %p121, %p122
      %p124 = scmp.ne.s32.totalorder %s115, %s116
      %p125 = scmp.eq.s32.totalorder %s21, 0
      %p126 = por %p124, %p125
      %p127 = scmp.ne.s32.totalorder %s115, %s116
      %p128 = scmp.eq.s32.totalorder %s22, 1
      %p129 = por %p127, %p128
      %p131 = scmp.ne.s32.totalorder %s116, %s130
      %p132 = scmp.eq.s32.totalorder %s22, 0
      %p133 = por %p131, %p132
      %s135 = sadd.s32 %s134, 1
      %p138 = scmp.eq.s32.totalorder %s16, 1
      %p139 = scmp.ne.s32.totalorder %s134, %s136
      %p140 = scmp.eq.s32.totalorder %s16, 0
      %p141 = por %p139, %p140
      %p142 = scmp.ne.s32.totalorder %s134, %s136
      %p143 = scmp.eq.s32.totalorder %s21, 1
      %p144 = por %p142, %p143
      %p145 = scmp.ne.s32.totalorder %s136, %s137
      %p146 = scmp.eq.s32.totalorder %s21, 0
      %p147 = por %p145, %p146
      %p148 = scmp.ne.s32.totalorder %s136, %s137
      %p149 = scmp.eq.s32.totalorder %s22, 1
      %p150 = por %p148, %p149
      %p152 = scmp.ne.s32.totalorder %s137, %s151
      %p153 = scmp.eq.s32.totalorder %s22, 0
      %p154 = por %p152, %p153
      %s156 = sadd.s32 %s155, 1
      %p159 = scmp.eq.s32.totalorder %s16, 1
      %p160 = scmp.ne.s32.totalorder %s155, %s157
      %p161 = scmp.eq.s32.totalorder %s16, 0
      %p162 = por %p160, %p161
      %p163 = scmp.ne.s32.totalorder %s155, %s157
      %p164 = scmp.eq.s32.totalorder %s21, 1
      %p165 = por %p163, %p164
      %p166 = scmp.ne.s32.totalorder %s157, %s158
      %p167 = scmp.eq.s32.totalorder %s21, 0
      %p168 = por %p166, %p167
      %p169 = scmp.ne.s32.totalorder %s157, %s158
      %p170 = scmp.eq.s32.totalorder %s22, 1
      %p171 = por %p169, %p170
      %p173 = scmp.ne.s32.totalorder %s158, %s172
      %p174 = scmp.eq.s32.totalorder %s22, 0
      %p175 = por %p173, %p174
      %s176 = ssub.s32 %s16, %s23
      %p177 = scmp.eq.s32.totalorder %s176, 0
      %s179 = sadd.s32 %s178, 1
      %s180 = scalar_select %p177, %s178, %s179
      %p183 = pneg %p177
      %p184 = scmp.eq.s32.totalorder %s16, 1
      %p185 = por %p183, %p184
      %p186 = scmp.ne.s32.totalorder %s178, %s181
      %p187 = scmp.eq.s32.totalorder %s16, 0
      %p188 = por %p186, %p187
      %p189 = scmp.ne.s32.totalorder %s178, %s181
      %p190 = scmp.eq.s32.totalorder %s21, 1
      %p191 = por %p189, %p190
      %p192 = scmp.ne.s32.totalorder %s181, %s182
      %p193 = scmp.eq.s32.totalorder %s21, 0
      %p194 = por %p192, %p193
      %p195 = scmp.ne.s32.totalorder %s181, %s182
      %p196 = scmp.eq.s32.totalorder %s22, 1
      %p197 = por %p195, %p196
      %p199 = scmp.ne.s32.totalorder %s182, %s198
      %p200 = scmp.eq.s32.totalorder %s22, 0
      %p201 = por %p199, %p200
      %p202 = scmp.le.s32.totalorder 1, %s16
      %p203 = scmp.lt.s32.totalorder %s16, 3
      %p204 = pnand %p202, %p203
      %p205 = pneg %p204
      // Predicated region
      $region9: #{tpu_custom_call.1} parent=5 // pred_check
        _
      $region10: #{tpu_custom_call.1} parent=5 // pred_check_branch
        %207 = sbr.rel (%p204) target = $region12
      $region11: #{tpu_custom_call.1} parent=5 // pred_region
        %s208 = ssub.s32 %s16, 1
        // Predicated region
        $region13: #{tpu_custom_call.1} parent=11 // pred_check
          %p209 = pneg %p63
        $region14: #{tpu_custom_call.1} parent=11 // pred_check_branch
          %211 = sbr.rel (%p209) target = $region16
        $region15: #{tpu_custom_call.1} parent=11 // pred_region
          _
        $region16: #{tpu_custom_call.1} parent=11 // pred_fallthru
          _
        // Predicated region
        $region17: #{tpu_custom_call.1} parent=11 // pred_check
          %p212 = pneg %p84
        $region18: #{tpu_custom_call.1} parent=11 // pred_check_branch
          %214 = sbr.rel (%p212) target = $region20
        $region19: #{tpu_custom_call.1} parent=11 // pred_region
          _
        $region20: #{tpu_custom_call.1} parent=11 // pred_fallthru
          _
        // Predicated region
        $region21: #{tpu_custom_call.1} parent=11 // pred_check
          %p215 = pneg %p105
        $region22: #{tpu_custom_call.1} parent=11 // pred_check_branch
          %217 = sbr.rel (%p215) target = $region24
        $region23: #{tpu_custom_call.1} parent=11 // pred_region
          _
        $region24: #{tpu_custom_call.1} parent=11 // pred_fallthru
          _
        // Predicated region
        $region25: #{tpu_custom_call.1} parent=11 // pred_check
          %p218 = pneg %p126
        $region26: #{tpu_custom_call.1} parent=11 // pred_check_branch
          %220 = sbr.rel (%p218) target = $region28
        $region27: #{tpu_custom_call.1} parent=11 // pred_region
          _
        $region28: #{tpu_custom_call.1} parent=11 // pred_fallthru
          _
        // Predicated region
        $region29: #{tpu_custom_call.1} parent=11 // pred_check
          %p221 = pneg %p147
        $region30: #{tpu_custom_call.1} parent=11 // pred_check_branch
          %223 = sbr.rel (%p221) target = $region32
        $region31: #{tpu_custom_call.1} parent=11 // pred_region
          _
        $region32: #{tpu_custom_call.1} parent=11 // pred_fallthru
          _
        // Predicated region
        $region33: #{tpu_custom_call.1} parent=11 // pred_check
          %p224 = pneg %p168
        $region34: #{tpu_custom_call.1} parent=11 // pred_check_branch
          %226 = sbr.rel (%p224) target = $region36
        $region35: #{tpu_custom_call.1} parent=11 // pred_region
          _
        $region36: #{tpu_custom_call.1} parent=11 // pred_fallthru
          _
      $region12: #{tpu_custom_call.1} parent=5 // pred_fallthru
        _
      %p227 = scmp.lt.s32.totalorder %s16, 2
      // Predicated region
      $region37: #{tpu_custom_call.1} parent=5 // pred_check
        %p228 = pneg %p227
      $region38: #{tpu_custom_call.1} parent=5 // pred_check_branch
        %230 = sbr.rel (%p228) target = $region40
      $region39: #{tpu_custom_call.1} parent=5 // pred_region
        // Predicated region
        $region41: #{tpu_custom_call.1} parent=39 // pred_check
          %p231 = pneg %p36
        $region42: #{tpu_custom_call.1} parent=39 // pred_check_branch
          %233 = sbr.rel (%p231) target = $region44
        $region43: #{tpu_custom_call.1} parent=39 // pred_region
          %p234 = scmp.lt.s32.totalorder %s16, 1
          %s235 = scalar_select %p234, %s16, 1
          %s236 = smul.addr %s235, 8
          %s237 = scalar_lea.vmem %s0, %s236
        $region44: #{tpu_custom_call.1} parent=39 // pred_fallthru
          _
      $region40: #{tpu_custom_call.1} parent=5 // pred_fallthru
        _
      %p238 = scmp.le.s32.totalorder 1, %s16
      %p239 = scmp.lt.s32.totalorder %s16, 3
      %p240 = pnand %p238, %p239
      %p241 = pneg %p240
      // Predicated region
      $region45: #{tpu_custom_call.1} parent=5 // pred_check
        _
      $region46: #{tpu_custom_call.1} parent=5 // pred_check_branch
        %243 = sbr.rel (%p240) target = $region48
      $region47: #{tpu_custom_call.1} parent=5 // pred_region
        %s244 = ssub.s32 %s16, 1
        %p245 = scmp.lt.s32.totalorder %s21, 1
        %s246 = scalar_select %p245, %s21, 1
        %s247 = smul.addr %s246, 8
        %s248 = scalar_lea.vmem %s0, %s247
        %p249 = pneg %p42
        %p250 = pneg %p39
        %p251 = pneg %p63
        %p252 = pneg %p60
        %p253 = pneg %p84
        %p254 = pneg %p81
        %p255 = pneg %p105
        %p256 = pneg %p102
        %p257 = pneg %p126
        %p258 = pneg %p123
        %p259 = pneg %p147
        %p260 = pneg %p144
        %p261 = pneg %p168
        %p262 = pneg %p165
        %p263 = pneg %p194
        %p264 = pneg %p191
        %s265 = sand.u32 %s181, 1
        %s266 = scalar_lea.sflag [#allocation3], %s265
        %s267 = sand.u32 %s181, 1
        %s268 = smul.addr %s267, 8
        %s269 = scalar_lea.vmem [#allocation2], %s268
        %p270 = scmp.lt.s32.totalorder %s21, 1
        %s271 = scalar_select %p270, %s21, 1
        %s272 = smul.addr %s271, 8
        %s273 = scalar_lea.vmem %s0, %s272
        %v274 = vld [vmem:[%s273] sm:$0xff]
        %vm275 = vcmask 261120
        %v276 = vsel %vm275, %v274, 0.0
        %277 = vadd.xlane.f32.xlu0 %v276
        %v278 = vpop.xlane.xlu0 %277
        %v279 = vmul.f32 %v278, 0.03125
        %v280 = vsub.f32 %v274, %v279
        %v281 = vmul.f32 %v280, %v280
        %v282 = vsel %vm275, %v281, 0.0
        %283 = vadd.xlane.f32.xlu0 %v282
        %v284 = vpop.xlane.xlu0 %283
        %v285 = vmul.f32 %v284, 0.03125
        %v286 = vadd.f32 %v285, 1e-05
        %v287 = vrsqrt.pop %v286
        %v288 = vmul.f32 %v287, %v286
        %v289 = vmul.f32 %v288, %v287
        %v290 = vmul.f32 0.5, %v289
        %v291 = vsub.f32 1.5, %v290
        %v292 = vmul.f32 %v287, %v291
        %vm293 = vweird.f32 %v286
        %vm294 = vweird.f32 %v287
        %vm295 = vmor %vm293, %vm294
        %v296 = vsel %vm295, %v287, %v292
        %v297 = vmul.f32 %v280, %v296
        %v298 = vld [vmem:[%s1] sm:$0x1]
        %v300 = vperm.slane %v298, 0
        %v302 = vmul.f32 %v297, %v300
        %v303 = vld [vmem:[%s2] sm:$0x1]
        %v305 = vperm.slane %v303, 0
        %v307 = vadd.f32 %v302, %v305
        %v308 = vld [vmem:[%s3] sm:$0xff]
        %v309 = vld [vmem:[%s3 + $0x8] sm:$0xff]
        %v310 = vld [vmem:[%s3 + $0x10] sm:$0xff]
        %v311 = vld [vmem:[%s3 + $0x18] sm:$0xff]
        %v312 = vld [vmem:[%s4] sm:$0x1]
        %v314 = vperm.slane %v312, 0
        %v317 = vsel %vm275, %v307, 0
        %319 = vmatpush.msra.mxu0 0.0
        %320 = vmatpush.msra.mxu0 0.0
        %321 = vmatpush.msra.mxu0 0.0
        %322 = vmatpush.msra.mxu0 0.0
        %323 = vmatpush.msra.mxu0 0.0
        %324 = vmatpush.msra.mxu0 0.0
        %325 = vmatpush.msra.mxu0 0.0
        %326 = vmatpush.msra.mxu0 0.0
        %327 = vmatpush.msra.mxu0 0.0
        %328 = vmatpush.msra.mxu0 0.0
        %329 = vmatpush.msra.mxu0 0.0
        %330 = vmatpush.msra.mxu0 0.0
        %331 = vmatpush.msra.mxu0 %v311
        %332 = vmatpush.msra.mxu0 %v310
        %333 = vmatpush.msra.mxu0 %v309
        %334 = vmatpush.msra.mxu0 %v308
        %335 = vmatmul.f32.gmra.mxu0 %v317
        %v336 = vpop.f32.mrf.mxu0
        %v337 = vadd.f32 %v314, %v336
        %338 = vdwg.mxu0
        %v339 = vmul.f32 %v337, 0.5
        %v340 = vmul.f32 %v337, 0.70710677
        %v341 = vmul.f32 %v340, %v340
        %v342 = vmin.f32 16.0, %v341
        %v343 = vmul.f32 %v342, 2.1237322e-06
        %v344 = vadd.f32 %v343, 0.00028619796
        %v345 = vmul.f32 %v342, %v344
        %v346 = vadd.f32 %v345, 0.0036580483
        %v347 = vmul.f32 %v342, %v346
        %v348 = vadd.f32 %v347, 0.05243302
        %v349 = vmul.f32 %v342, %v348
        %v350 = vadd.f32 %v349, 0.18741608
        %v351 = vmul.f32 %v342, %v350
        %v352 = vadd.f32 %v351, 1.1283791
        %v353 = vmul.f32 %v340, %v352
        %v354 = vmul.f32 %v342, 3.8918573e-05
        %v355 = vadd.f32 %v354, 0.001143296
        %v356 = vmul.f32 %v342, %v355
        %v357 = vadd.f32 %v356, 0.014752088
        %v358 = vmul.f32 %v342, %v357
        %v359 = vadd.f32 %v358, 0.112945676
        %v360 = vmul.f32 %v342, %v359
        %v361 = vadd.f32 %v360, 0.4994258
        %v362 = vmul.f32 %v342, %v361
        %v363 = vadd.f32 %v362, 1.0
        %v364 = vrcp.pop %v363
        %v365 = vmul.f32 %v363, %v364
        %v366 = vsub.f32 1.0, %v365
        %v367 = vmul.f32 %v364, %v366
        %v368 = vadd.f32 %v364, %v367
        %vm369 = vweird.f32 %v363
        %vm370 = vweird.f32 %v364
        %vm371 = vmor %vm369, %vm370
        %v372 = vsel %vm371, %v364, %v368
        %v373 = vand.u32 2147483647, %v363
        %vm374 = vcmp.eq.f32.partialorder %v373, 8.507059e+37
        %v375 = vand.u32 %v363, 2147483648
        %v376 = vor.u32 1.1754944e-38, %v375
        %v377 = vsel %vm374, %v376, %v372
        %v378 = vmul.f32 %v353, %v377
        %v379 = vmin.f32 %v378, 1.0
        %v380 = vmax.f32 %v379, -1.0
        %v381 = vadd.f32 %v380, 1.0
        %v382 = vmul.f32 %v339, %v381
        %v383 = vld [vmem:[%s5] sm:$0xff]
        %v384 = vld [vmem:[%s5 + $0x8] sm:$0xff]
        %v385 = vld [vmem:[%s5 + $0x10] sm:$0xff]
        %v386 = vld [vmem:[%s5 + $0x18] sm:$0xff]
        %v387 = vld [vmem:[%s5 + $0x20] sm:$0xff]
        %v388 = vld [vmem:[%s5 + $0x28] sm:$0xff]
        %v389 = vld [vmem:[%s5 + $0x30] sm:$0xff]
        %v390 = vld [vmem:[%s5 + $0x38] sm:$0xff]
        %v391 = vld [vmem:[%s6] sm:$0x1]
        %v393 = vperm.slane %v391, 0
        %vm395 = vcmask 523264
        %v397 = vsel %vm395, %v382, 0
        %399 = vmatpush.msra.mxu0 0.0
        %400 = vmatpush.msra.mxu0 0.0
        %401 = vmatpush.msra.mxu0 0.0
        %402 = vmatpush.msra.mxu0 0.0
        %403 = vmatpush.msra.mxu0 0.0
        %404 = vmatpush.msra.mxu0 0.0
        %405 = vmatpush.msra.mxu0 0.0
        %406 = vmatpush.msra.mxu0 0.0
        %407 = vmatpush.msra.mxu0 %v390
        %408 = vmatpush.msra.mxu0 %v389
        %409 = vmatpush.msra.mxu0 %v388
        %410 = vmatpush.msra.mxu0 %v387
        %411 = vmatpush.msra.mxu0 %v386
        %412 = vmatpush.msra.mxu0 %v385
        %413 = vmatpush.msra.mxu0 %v384
        %414 = vmatpush.msra.mxu0 %v383
        %415 = vmatmul.f32.gmra.mxu0 %v397
        %v416 = vpop.f32.mrf.mxu0
        %v417 = vadd.f32 %v393, %v416
        %418 = vdwg.mxu0
        %419 = vst.msk [vmem:[%s269] sm:$0xff] %vm275, %v417
        %s420 = sand.u32 %s181, 1
        %s421 = scalar_lea.sflag [#allocation3], %s420
        %s422 = sand.u32 %s181, 1
        %s423 = smul.addr %s422, 8
        %s424 = scalar_lea.vmem [#allocation2], %s423
        // Predicated region
        $region49: #{tpu_custom_call.1} parent=47 // pred_check
          %p425 = pneg %p191
        $region50: #{tpu_custom_call.1} parent=47 // pred_check_branch
          %427 = sbr.rel (%p425) target = $region52
        $region51: #{tpu_custom_call.1} parent=47 // pred_region
          %429 = vsyncadd %s421, 0
          %s430 = smul.addr %s21, 8
          %s431 = scalar_lea.hbm %s7, %s430
          %s433 = sshll.u32 %s424, 4
          %s434 = int_to_ptr.vmem [resolvable:$true] %s433
          %s435 = sshll.u32 %s431, 4
          %s436 = int_to_ptr.hbm [resolvable:$true] %s435
          %438 = dma.vmem_to_hbm [thread:$0]  %s434, 128, %s436, %s421
        $region52: #{tpu_custom_call.1} parent=47 // pred_fallthru
          _
      $region48: #{tpu_custom_call.1} parent=5 // pred_fallthru
        _
      %p439 = scmp.le.s32.totalorder 2, %s16
      // Predicated region
      $region53: #{tpu_custom_call.1} parent=5 // pred_check
        %p440 = pneg %p439
      $region54: #{tpu_custom_call.1} parent=5 // pred_check_branch
        %442 = sbr.rel (%p440) target = $region56
      $region55: #{tpu_custom_call.1} parent=5 // pred_region
        %s443 = ssub.s32 %s16, 2
        // Predicated region
        $region57: #{tpu_custom_call.1} parent=55 // pred_check
          %p444 = pneg %p197
        $region58: #{tpu_custom_call.1} parent=55 // pred_check_branch
          %446 = sbr.rel (%p444) target = $region60
        $region59: #{tpu_custom_call.1} parent=55 // pred_region
          %s447 = sand.u32 %s182, 1
          %s448 = scalar_lea.sflag [#allocation3], %s447
          %s449 = sand.u32 %s182, 1
          %s450 = smul.addr %s449, 8
          %s451 = scalar_lea.vmem [#allocation2], %s450
          %453 = dma.done %s448, 128
        $region60: #{tpu_custom_call.1} parent=55 // pred_fallthru
          _
      $region56: #{tpu_custom_call.1} parent=5 // pred_fallthru
        _
    $region6: #{tpu_custom_call.1} parent=1 // loop_footer
      %s20 = sadd.s32 1, %s16
    $region7: #{tpu_custom_call.1} parent=1 // loop_footer_branch
      %15 = sbr.rel target = $region3
    $region8: #{tpu_custom_call.1} parent=1 // loop_exit
      _
    %454 = vsyncpa [#allocation3], 1
    %s455 = scalar_lea.sflag [#allocation3], 1
    %456 = vsyncpa %s455, 1

</llo_original>
